<compile_context>
chip_gen: v5e
topology: v5e:2x2
jax: 0.10.0
libtpu: 0.0.40
codegen_flags: <defaults>
</compile_context>

<pallas_src>
import jax
import jax.numpy as jnp
from jax.experimental import pallas as pl
from jax.experimental.pallas import tpu as pltpu

FEATURES = 1
ACTION_SPACE = 12
HIDDEN = 64
NEG_SLOPE = 0.01       # nn.LeakyReLU() default


def _leaky_relu(x):
    return jnp.where(x > 0, x, NEG_SLOPE * x)


def _round_up(n, m):
    return ((n + m - 1) // m) * m


def _cdiv(a, b):
    return -(-a // b)


def mlp_kernel(x_ref,
               w1_ref, b1_ref,
               w2_ref, b2_ref,
               w3_ref, b3_ref,
               w4_ref, b4_ref,
               o_ref):
    """Transposed formulation: batch on the lane axis.

    x_ref : [1, TB]              lane-dense input tile
    w1_ref: [HIDDEN, 1]          (= W1.T; degenerate K=1 layer)
    w2/w3 : [HIDDEN, HIDDEN]     (= W.T, i.e. PyTorch-native [out, in])
    w4_ref: [ACTION_SPACE, HIDDEN]
    b*    : [out, 1]             column biases
    o_ref : [ACTION_SPACE, TB]   lane-dense, unpadded output tile
    """
    xt = x_ref[...]                                          # [1, TB]

    # Layer 1: K=1 contraction as a VPU outer product, bias + act fused.
    h = _leaky_relu(w1_ref[...] * xt + b1_ref[...])          # [H, TB]

    # Layers 2 & 3: MXU matmuls, bias + LeakyReLU fused on the VPU.
    h = _leaky_relu(
        jnp.dot(w2_ref[...], h, preferred_element_type=jnp.float32)
        + b2_ref[...])
    h = _leaky_relu(
        jnp.dot(w3_ref[...], h, preferred_element_type=jnp.float32)
        + b3_ref[...])

    # Output layer: [12, TB] lane-dense store (no zero padding).
    out = (jnp.dot(w4_ref[...], h, preferred_element_type=jnp.float32)
           + b4_ref[...])
    o_ref[...] = out.astype(o_ref.dtype)


def mlp_forward(x, params, *, tb=4096):
    """x: [B, FEATURES] (or [B]) f32. Returns [B, ACTION_SPACE] f32."""
    x = jnp.asarray(x, jnp.float32)
    if x.ndim == 1:
        x = x[:, None]
    B = x.shape[0]
    assert x.shape[1] == FEATURES

    # Lane-dense transposed input: [1, B].
    xt = x.reshape(1, B)

    # --- Batch-tile (lane-axis) sizing ---------------------------------
    tb = _round_up(max(int(tb), 128), 128)
    B_lanes = _round_up(B, 128)
    tb = min(tb, B_lanes)
    # Keep >= 2 grid steps when possible so the "parallel" axis shards
    # across both TensorCores on v7x (harmless on v5e/v6e).
    if B_lanes >= 2 * 128 and tb > B_lanes // 2:
        tb = max(128, ((B_lanes // 2) // 128) * 128)
    # Re-fit the tile to the batch to minimize trailing padding.
    n_steps = _cdiv(B_lanes, tb)
    tb = _round_up(_cdiv(B_lanes, n_steps), 128)
    B_pad = n_steps * tb

    if B_pad != B:
        xt = jnp.pad(xt, ((0, 0), (0, B_pad - B)))

    out_t = pl.pallas_call(
        mlp_kernel,
        out_shape=jax.ShapeDtypeStruct((ACTION_SPACE, B_pad), jnp.float32),
        grid=(n_steps,),
        in_specs=[
            pl.BlockSpec((1, tb), lambda i: (0, i)),               # x tile
            pl.BlockSpec((HIDDEN, FEATURES), lambda i: (0, 0)),    # w1^T
            pl.BlockSpec((HIDDEN, 1), lambda i: (0, 0)),           # b1
            pl.BlockSpec((HIDDEN, HIDDEN), lambda i: (0, 0)),      # w2^T
            pl.BlockSpec((HIDDEN, 1), lambda i: (0, 0)),           # b2
            pl.BlockSpec((HIDDEN, HIDDEN), lambda i: (0, 0)),      # w3^T
            pl.BlockSpec((HIDDEN, 1), lambda i: (0, 0)),           # b3
            pl.BlockSpec((ACTION_SPACE, HIDDEN), lambda i: (0, 0)),  # w4^T
            pl.BlockSpec((ACTION_SPACE, 1), lambda i: (0, 0)),       # b4
        ],
        out_specs=pl.BlockSpec((ACTION_SPACE, tb), lambda i: (0, i)),
        compiler_params=pltpu.CompilerParams(
            dimension_semantics=("parallel",)),
    )(xt,
      params["wt1"], params["b1"],
      params["wt2"], params["b2"],
      params["wt3"], params["b3"],
      params["wt4"], params["b4"])

    # Back to the PyTorch convention [B, ACTION_SPACE].
    return out_t[:, :B].T


def init_params(key):
    """Deterministic init mirroring PyTorch nn.Linear default
    (uniform(-1/sqrt(fan_in), 1/sqrt(fan_in))). Weights are stored in
    PyTorch-native [out_features, in_features] layout (i.e. already
    transposed for the kernel); biases as [out_features, 1] columns."""
    dims = [(FEATURES, HIDDEN), (HIDDEN, HIDDEN), (HIDDEN, HIDDEN),
            (HIDDEN, ACTION_SPACE)]
    params = {}
    keys = jax.random.split(key, 2 * len(dims))
    for i, (fan_in, fan_out) in enumerate(dims):
        bound = float(fan_in) ** -0.5
        wt = jax.random.uniform(keys[2 * i], (fan_out, fan_in),
                                minval=-bound, maxval=bound,
                                dtype=jnp.float32)
        b = jax.random.uniform(keys[2 * i + 1], (fan_out, 1),
                               minval=-bound, maxval=bound,
                               dtype=jnp.float32)
        params[f"wt{i + 1}"] = wt
        params[f"b{i + 1}"] = b
    return params


def mlp_reference(x, params):
    """Plain-JAX reference in the original (batch-rows) orientation."""
    h = x
    for i in range(1, 5):
        h = h @ params[f"wt{i}"].T + params[f"b{i}"].T
        if i < 4:
            h = jnp.where(h > 0, h, NEG_SLOPE * h)
    return h


if __name__ == "__main__":
    key = jax.random.PRNGKey(0)
    pkey, xkey1, xkey2 = jax.random.split(key, 3)
    params = init_params(pkey)

    # Small batch (single grid step).
    B1 = 8
    x1 = jax.random.normal(xkey1, (B1, FEATURES), dtype=jnp.float32)
    out1 = jax.block_until_ready(mlp_forward(x1, params))
    ref1 = mlp_reference(x1, params)
    assert out1.shape == (B1, ACTION_SPACE)
    assert jnp.allclose(out1, ref1, atol=5e-5, rtol=5e-5)

    # Batch that exercises multiple grid steps and the lane-padding path.
    B2 = 300
    x2 = jax.random.normal(xkey2, (B2, FEATURES), dtype=jnp.float32)
    out2 = jax.block_until_ready(mlp_forward(x2, params))
    ref2 = mlp_reference(x2, params)
    assert out2.shape == (B2, ACTION_SPACE)
    assert jnp.allclose(out2, ref2, atol=5e-5, rtol=5e-5)

    print("KERNEL_OK")
</pallas_src>

<mosaic_0001>
module attributes {stable_mosaic.version = 11 : i64} {
  func.func @mlp_kernel(%arg0: i32, %arg1: memref<1x128xf32, #tpu.memory_space<vmem>>, %arg2: memref<64x1xf32, #tpu.memory_space<vmem>>, %arg3: memref<64x1xf32, #tpu.memory_space<vmem>>, %arg4: memref<64x64xf32, #tpu.memory_space<vmem>>, %arg5: memref<64x1xf32, #tpu.memory_space<vmem>>, %arg6: memref<64x64xf32, #tpu.memory_space<vmem>>, %arg7: memref<64x1xf32, #tpu.memory_space<vmem>>, %arg8: memref<12x64xf32, #tpu.memory_space<vmem>>, %arg9: memref<12x1xf32, #tpu.memory_space<vmem>>, %arg10: memref<12x128xf32, #tpu.memory_space<vmem>>) attributes {dimension_semantics = [#tpu.dimension_semantics<parallel>], iteration_bounds = array<i64: 1>, scalar_prefetch = 0 : i64, scratch_operands = 0 : i64, tpu.core_type = #tpu.core_type<tc>, window_params = [{transform_indices = @transform_0, window_bounds = array<i64: 1, 128>}, {pipeline_mode = #tpu.pipeline_mode<synchronous>, transform_indices = @transform_1, window_bounds = array<i64: 64, 1>}, {pipeline_mode = #tpu.pipeline_mode<synchronous>, transform_indices = @transform_2, window_bounds = array<i64: 64, 1>}, {pipeline_mode = #tpu.pipeline_mode<synchronous>, transform_indices = @transform_3, window_bounds = array<i64: 64, 64>}, {pipeline_mode = #tpu.pipeline_mode<synchronous>, transform_indices = @transform_4, window_bounds = array<i64: 64, 1>}, {pipeline_mode = #tpu.pipeline_mode<synchronous>, transform_indices = @transform_5, window_bounds = array<i64: 64, 64>}, {pipeline_mode = #tpu.pipeline_mode<synchronous>, transform_indices = @transform_6, window_bounds = array<i64: 64, 1>}, {pipeline_mode = #tpu.pipeline_mode<synchronous>, transform_indices = @transform_7, window_bounds = array<i64: 12, 64>}, {pipeline_mode = #tpu.pipeline_mode<synchronous>, transform_indices = @transform_8, window_bounds = array<i64: 12, 1>}, {transform_indices = @transform_9, window_bounds = array<i64: 12, 128>}]} {
    %c0 = arith.constant 0 : index
    %c0_0 = arith.constant 0 : index
    %0 = vector.load %arg1[%c0, %c0_0] : memref<1x128xf32, #tpu.memory_space<vmem>>, vector<1x128xf32>
    %c0_1 = arith.constant 0 : index
    %c0_2 = arith.constant 0 : index
    %1 = vector.load %arg2[%c0_1, %c0_2] : memref<64x1xf32, #tpu.memory_space<vmem>>, vector<64x1xf32>
    %2 = vector.broadcast %1 : vector<64x1xf32> to vector<64x128xf32>
    %3 = vector.broadcast %0 : vector<1x128xf32> to vector<64x128xf32>
    %4 = arith.mulf %2, %3 : vector<64x128xf32>
    %c0_3 = arith.constant 0 : index
    %c0_4 = arith.constant 0 : index
    %5 = vector.load %arg3[%c0_3, %c0_4] : memref<64x1xf32, #tpu.memory_space<vmem>>, vector<64x1xf32>
    %6 = vector.broadcast %5 : vector<64x1xf32> to vector<64x128xf32>
    %7 = arith.addf %4, %6 : vector<64x128xf32>
    %cst = arith.constant 0.000000e+00 : f32
    %8 = vector.broadcast %cst : f32 to vector<64x128xf32>
    %9 = arith.cmpf ogt, %7, %8 : vector<64x128xf32>
    %cst_5 = arith.constant 0.00999999977 : f32
    %10 = vector.broadcast %cst_5 : f32 to vector<64x128xf32>
    %11 = arith.mulf %10, %7 : vector<64x128xf32>
    %12 = arith.select %9, %7, %11 : vector<64x128xi1>, vector<64x128xf32>
    %c0_6 = arith.constant 0 : index
    %c0_7 = arith.constant 0 : index
    %13 = vector.load %arg4[%c0_6, %c0_7] : memref<64x64xf32, #tpu.memory_space<vmem>>, vector<64x64xf32>
    %cst_8 = arith.constant dense<0.000000e+00> : vector<64x128xf32>
    %14 = tpu.matmul %13, %12, %cst_8 {dimension_numbers = #tpu.dot_dimension_numbers<[1], [0], [0], [1], [0, 0, 1, 1], [], []>} : vector<64x64xf32>, vector<64x128xf32>, vector<64x128xf32> -> vector<64x128xf32>
    %c0_9 = arith.constant 0 : index
    %c0_10 = arith.constant 0 : index
    %15 = vector.load %arg5[%c0_9, %c0_10] : memref<64x1xf32, #tpu.memory_space<vmem>>, vector<64x1xf32>
    %16 = vector.broadcast %15 : vector<64x1xf32> to vector<64x128xf32>
    %17 = arith.addf %14, %16 : vector<64x128xf32>
    %cst_11 = arith.constant 0.000000e+00 : f32
    %18 = vector.broadcast %cst_11 : f32 to vector<64x128xf32>
    %19 = arith.cmpf ogt, %17, %18 : vector<64x128xf32>
    %cst_12 = arith.constant 0.00999999977 : f32
    %20 = vector.broadcast %cst_12 : f32 to vector<64x128xf32>
    %21 = arith.mulf %20, %17 : vector<64x128xf32>
    %22 = arith.select %19, %17, %21 : vector<64x128xi1>, vector<64x128xf32>
    %c0_13 = arith.constant 0 : index
    %c0_14 = arith.constant 0 : index
    %23 = vector.load %arg6[%c0_13, %c0_14] : memref<64x64xf32, #tpu.memory_space<vmem>>, vector<64x64xf32>
    %cst_15 = arith.constant dense<0.000000e+00> : vector<64x128xf32>
    %24 = tpu.matmul %23, %22, %cst_15 {dimension_numbers = #tpu.dot_dimension_numbers<[1], [0], [0], [1], [0, 0, 1, 1], [], []>} : vector<64x64xf32>, vector<64x128xf32>, vector<64x128xf32> -> vector<64x128xf32>
    %c0_16 = arith.constant 0 : index
    %c0_17 = arith.constant 0 : index
    %25 = vector.load %arg7[%c0_16, %c0_17] : memref<64x1xf32, #tpu.memory_space<vmem>>, vector<64x1xf32>
    %26 = vector.broadcast %25 : vector<64x1xf32> to vector<64x128xf32>
    %27 = arith.addf %24, %26 : vector<64x128xf32>
    %cst_18 = arith.constant 0.000000e+00 : f32
    %28 = vector.broadcast %cst_18 : f32 to vector<64x128xf32>
    %29 = arith.cmpf ogt, %27, %28 : vector<64x128xf32>
    %cst_19 = arith.constant 0.00999999977 : f32
    %30 = vector.broadcast %cst_19 : f32 to vector<64x128xf32>
    %31 = arith.mulf %30, %27 : vector<64x128xf32>
    %32 = arith.select %29, %27, %31 : vector<64x128xi1>, vector<64x128xf32>
    %c0_20 = arith.constant 0 : index
    %c0_21 = arith.constant 0 : index
    %33 = vector.load %arg8[%c0_20, %c0_21] : memref<12x64xf32, #tpu.memory_space<vmem>>, vector<12x64xf32>
    %cst_22 = arith.constant dense<0.000000e+00> : vector<12x128xf32>
    %34 = tpu.matmul %33, %32, %cst_22 {dimension_numbers = #tpu.dot_dimension_numbers<[1], [0], [0], [1], [0, 0, 1, 1], [], []>} : vector<12x64xf32>, vector<64x128xf32>, vector<12x128xf32> -> vector<12x128xf32>
    %c0_23 = arith.constant 0 : index
    %c0_24 = arith.constant 0 : index
    %35 = vector.load %arg9[%c0_23, %c0_24] : memref<12x1xf32, #tpu.memory_space<vmem>>, vector<12x1xf32>
    %36 = vector.broadcast %35 : vector<12x1xf32> to vector<12x128xf32>
    %37 = arith.addf %34, %36 : vector<12x128xf32>
    %c0_25 = arith.constant 0 : index
    %c0_26 = arith.constant 0 : index
    %38 = vector.load %arg10[%c0_25, %c0_26] : memref<12x128xf32, #tpu.memory_space<vmem>>, vector<12x128xf32>
    tpu.vector_store %arg10[%c0_25, %c0_26], %37 {strides = array<i32>} : memref<12x128xf32, #tpu.memory_space<vmem>>, vector<12x128xf32>,
    return
  }
  func.func @transform_0(%arg0: i32) -> (i32, i32) {
    %c0_i32 = arith.constant 0 : i32
    %c0_i32_0 = arith.constant 0 : i32
    return %c0_i32, %arg0 : i32, i32
  }
  func.func @transform_1(%arg0: i32) -> (i32, i32) {
    %c0_i32 = arith.constant 0 : i32
    %c0_i32_0 = arith.constant 0 : i32
    %c0_i32_1 = arith.constant 0 : i32
    return %c0_i32, %c0_i32_0 : i32, i32
  }
  func.func @transform_2(%arg0: i32) -> (i32, i32) {
    %c0_i32 = arith.constant 0 : i32
    %c0_i32_0 = arith.constant 0 : i32
    %c0_i32_1 = arith.constant 0 : i32
    return %c0_i32, %c0_i32_0 : i32, i32
  }
  func.func @transform_3(%arg0: i32) -> (i32, i32) {
    %c0_i32 = arith.constant 0 : i32
    %c0_i32_0 = arith.constant 0 : i32
    %c0_i32_1 = arith.constant 0 : i32
    return %c0_i32, %c0_i32_0 : i32, i32
  }
  func.func @transform_4(%arg0: i32) -> (i32, i32) {
    %c0_i32 = arith.constant 0 : i32
    %c0_i32_0 = arith.constant 0 : i32
    %c0_i32_1 = arith.constant 0 : i32
    return %c0_i32, %c0_i32_0 : i32, i32
  }
  func.func @transform_5(%arg0: i32) -> (i32, i32) {
    %c0_i32 = arith.constant 0 : i32
    %c0_i32_0 = arith.constant 0 : i32
    %c0_i32_1 = arith.constant 0 : i32
    return %c0_i32, %c0_i32_0 : i32, i32
  }
  func.func @transform_6(%arg0: i32) -> (i32, i32) {
    %c0_i32 = arith.constant 0 : i32
    %c0_i32_0 = arith.constant 0 : i32
    %c0_i32_1 = arith.constant 0 : i32
    return %c0_i32, %c0_i32_0 : i32, i32
  }
  func.func @transform_7(%arg0: i32) -> (i32, i32) {
    %c0_i32 = arith.constant 0 : i32
    %c0_i32_0 = arith.constant 0 : i32
    %c0_i32_1 = arith.constant 0 : i32
    return %c0_i32, %c0_i32_0 : i32, i32
  }
  func.func @transform_8(%arg0: i32) -> (i32, i32) {
    %c0_i32 = arith.constant 0 : i32
    %c0_i32_0 = arith.constant 0 : i32
    %c0_i32_1 = arith.constant 0 : i32
    return %c0_i32, %c0_i32_0 : i32, i32
  }
  func.func @transform_9(%arg0: i32) -> (i32, i32) {
    %c0_i32 = arith.constant 0 : i32
    %c0_i32_0 = arith.constant 0 : i32
    return %c0_i32, %arg0 : i32, i32
  }
}

</mosaic_0001>

<llo_original>
// kernel: tpu_custom_call.1
$region0: #{tpu_custom_call.1}
  #allocation0 [shape = 'u32[]', space=smem, size = 0x4, offset = 0x4, fixed_abs, tag = 'smem constant byte address 0x4 - core index']
  #allocation1 [shape = 'u32[72,128]{1,0:T(1,128)}', space=vmem, size = 0x9000, scoped, tag = 'internal scratch']
  %s0 = inlined_call_operand.vmem [shape: f32[1,128], index: 0, kind: input, shape index: {}]
  %s1 = inlined_call_operand.vmem [shape: f32[64,1], index: 1, kind: input, shape index: {}]
  %s2 = inlined_call_operand.vmem [shape: f32[64,1], index: 2, kind: input, shape index: {}]
  %s3 = inlined_call_operand.vmem [shape: f32[64,64], index: 3, kind: input, shape index: {}]
  %s4 = inlined_call_operand.vmem [shape: f32[64,1], index: 4, kind: input, shape index: {}]
  %s5 = inlined_call_operand.vmem [shape: f32[64,64], index: 5, kind: input, shape index: {}]
  %s6 = inlined_call_operand.vmem [shape: f32[64,1], index: 6, kind: input, shape index: {}]
  %s7 = inlined_call_operand.vmem [shape: f32[12,64], index: 7, kind: input, shape index: {}]
  %s8 = inlined_call_operand.vmem [shape: f32[12,1], index: 8, kind: input, shape index: {}]
  %s9 = inlined_call_operand.hbm [shape: f32[12,128], index: 9, kind: output, shape index: {}]
  %s10 = sld [smem:[#allocation0]]
  $region46: #{tpu_custom_call.1} parent=0
    _
  %s12 = ssub.s32 1, %s10
  %s13 = scalar_select 0, %s12, %s10
  $region1: #{tpu_custom_call.1} parent=0
    #allocation2 [shape = 'u8[8192]{0}', space=vmem, size = 0x2000, scoped, tag = 'output window, operand 0, single buffered']
    #allocation3 [shape = 's32[1]{0}', space=sflag, size = 0x4, scoped, tag = 'scoped memory for tpu_custom_call.1']
    %14 = vsyncpa [#allocation3], 0
    // Predicated region
    $region2: #{tpu_custom_call.1} parent=1 // pred_check
      _
    $region3: #{tpu_custom_call.1} parent=1 // pred_check_branch
      %16 = sbr.rel (0) target = $region5
    $region4: #{tpu_custom_call.1} parent=1 // pred_region
      _
    $region5: #{tpu_custom_call.1} parent=1 // pred_fallthru
      _
    // Predicated region
    $region6: #{tpu_custom_call.1} parent=1 // pred_check
      _
    $region7: #{tpu_custom_call.1} parent=1 // pred_check_branch
      %18 = sbr.rel (0) target = $region9
    $region8: #{tpu_custom_call.1} parent=1 // pred_region
      _
    $region9: #{tpu_custom_call.1} parent=1 // pred_fallthru
      _
    // Predicated region
    $region10: #{tpu_custom_call.1} parent=1 // pred_check
      _
    $region11: #{tpu_custom_call.1} parent=1 // pred_check_branch
      %20 = sbr.rel (0) target = $region13
    $region12: #{tpu_custom_call.1} parent=1 // pred_region
      _
    $region13: #{tpu_custom_call.1} parent=1 // pred_fallthru
      _
    // Predicated region
    $region14: #{tpu_custom_call.1} parent=1 // pred_check
      _
    $region15: #{tpu_custom_call.1} parent=1 // pred_check_branch
      %22 = sbr.rel (0) target = $region17
    $region16: #{tpu_custom_call.1} parent=1 // pred_region
      _
    $region17: #{tpu_custom_call.1} parent=1 // pred_fallthru
      _
    // Predicated region
    $region18: #{tpu_custom_call.1} parent=1 // pred_check
      _
    $region19: #{tpu_custom_call.1} parent=1 // pred_check_branch
      %24 = sbr.rel (0) target = $region21
    $region20: #{tpu_custom_call.1} parent=1 // pred_region
      _
    $region21: #{tpu_custom_call.1} parent=1 // pred_fallthru
      _
    // Predicated region
    $region22: #{tpu_custom_call.1} parent=1 // pred_check
      _
    $region23: #{tpu_custom_call.1} parent=1 // pred_check_branch
      %26 = sbr.rel (0) target = $region25
    $region24: #{tpu_custom_call.1} parent=1 // pred_region
      _
    $region25: #{tpu_custom_call.1} parent=1 // pred_fallthru
      _
    // Predicated region
    $region26: #{tpu_custom_call.1} parent=1 // pred_check
      _
    $region27: #{tpu_custom_call.1} parent=1 // pred_check_branch
      %28 = sbr.rel (0) target = $region29
    $region28: #{tpu_custom_call.1} parent=1 // pred_region
      _
    $region29: #{tpu_custom_call.1} parent=1 // pred_fallthru
      _
    // Predicated region
    $region30: #{tpu_custom_call.1} parent=1 // pred_check
      _
    $region31: #{tpu_custom_call.1} parent=1 // pred_check_branch
      %30 = sbr.rel (0) target = $region33
    $region32: #{tpu_custom_call.1} parent=1 // pred_region
      _
    $region33: #{tpu_custom_call.1} parent=1 // pred_fallthru
      _
    // Predicated region
    $region34: #{tpu_custom_call.1} parent=1 // pred_check
      _
    $region35: #{tpu_custom_call.1} parent=1 // pred_check_branch
      %32 = sbr.rel (0) target = $region37
    $region36: #{tpu_custom_call.1} parent=1 // pred_region
      _
    $region37: #{tpu_custom_call.1} parent=1 // pred_fallthru
      _
    %v33 = vld [vmem:[%s0] sm:$0x1]
    %v34 = vld [vmem:[%s1] sm:$0xff]
    %v35 = vld [vmem:[%s1 + $0x8] sm:$0xff]
    %v36 = vld [vmem:[%s1 + $0x10] sm:$0xff]
    %v37 = vld [vmem:[%s1 + $0x18] sm:$0xff]
    %v38 = vld [vmem:[%s1 + $0x20] sm:$0xff]
    %v39 = vld [vmem:[%s1 + $0x28] sm:$0xff]
    %v40 = vld [vmem:[%s1 + $0x30] sm:$0xff]
    %v41 = vld [vmem:[%s1 + $0x38] sm:$0xff]
    %43 = vset.pattern.permute.xlu0 0
    %44 = vperm.xlu0 %43, %v34
    %v45 = vpop.permute.xlu0 %44
    %48 = vset.pattern.permute.xlu0 0
    %49 = vperm.xlu0 %48, %v35
    %v50 = vpop.permute.xlu0 %49
    %53 = vset.pattern.permute.xlu0 0
    %54 = vperm.xlu0 %53, %v36
    %v55 = vpop.permute.xlu0 %54
    %58 = vset.pattern.permute.xlu0 0
    %59 = vperm.xlu0 %58, %v37
    %v60 = vpop.permute.xlu0 %59
    %63 = vset.pattern.permute.xlu0 0
    %64 = vperm.xlu0 %63, %v38
    %v65 = vpop.permute.xlu0 %64
    %68 = vset.pattern.permute.xlu0 0
    %69 = vperm.xlu0 %68, %v39
    %v70 = vpop.permute.xlu0 %69
    %73 = vset.pattern.permute.xlu0 0
    %74 = vperm.xlu0 %73, %v40
    %v75 = vpop.permute.xlu0 %74
    %78 = vset.pattern.permute.xlu0 0
    %79 = vperm.xlu0 %78, %v41
    %v80 = vpop.permute.xlu0 %79
    %v83 = vperm.slane %v33, 0
    %v85 = vmul.f32 %v45, %v83
    %v86 = vmul.f32 %v50, %v83
    %v87 = vmul.f32 %v55, %v83
    %v88 = vmul.f32 %v60, %v83
    %v89 = vmul.f32 %v65, %v83
    %v90 = vmul.f32 %v70, %v83
    %v91 = vmul.f32 %v75, %v83
    %v92 = vmul.f32 %v80, %v83
    %v93 = vld [vmem:[%s2] sm:$0xff]
    %v94 = vld [vmem:[%s2 + $0x8] sm:$0xff]
    %v95 = vld [vmem:[%s2 + $0x10] sm:$0xff]
    %v96 = vld [vmem:[%s2 + $0x18] sm:$0xff]
    %v97 = vld [vmem:[%s2 + $0x20] sm:$0xff]
    %v98 = vld [vmem:[%s2 + $0x28] sm:$0xff]
    %v99 = vld [vmem:[%s2 + $0x30] sm:$0xff]
    %v100 = vld [vmem:[%s2 + $0x38] sm:$0xff]
    %102 = vset.pattern.permute.xlu0 0
    %103 = vperm.xlu0 %102, %v93
    %v104 = vpop.permute.xlu0 %103
    %107 = vset.pattern.permute.xlu0 0
    %108 = vperm.xlu0 %107, %v94
    %v109 = vpop.permute.xlu0 %108
    %112 = vset.pattern.permute.xlu0 0
    %113 = vperm.xlu0 %112, %v95
    %v114 = vpop.permute.xlu0 %113
    %117 = vset.pattern.permute.xlu0 0
    %118 = vperm.xlu0 %117, %v96
    %v119 = vpop.permute.xlu0 %118
    %122 = vset.pattern.permute.xlu0 0
    %123 = vperm.xlu0 %122, %v97
    %v124 = vpop.permute.xlu0 %123
    %127 = vset.pattern.permute.xlu0 0
    %128 = vperm.xlu0 %127, %v98
    %v129 = vpop.permute.xlu0 %128
    %132 = vset.pattern.permute.xlu0 0
    %133 = vperm.xlu0 %132, %v99
    %v134 = vpop.permute.xlu0 %133
    %137 = vset.pattern.permute.xlu0 0
    %138 = vperm.xlu0 %137, %v100
    %v139 = vpop.permute.xlu0 %138
    %v141 = vadd.f32 %v85, %v104
    %v142 = vadd.f32 %v86, %v109
    %v143 = vadd.f32 %v87, %v114
    %v144 = vadd.f32 %v88, %v119
    %v145 = vadd.f32 %v89, %v124
    %v146 = vadd.f32 %v90, %v129
    %v147 = vadd.f32 %v91, %v134
    %v148 = vadd.f32 %v92, %v139
    %vm149 = vcmp.gt.f32.partialorder %v141, 0.0
    %vm150 = vcmp.gt.f32.partialorder %v142, 0.0
    %vm151 = vcmp.gt.f32.partialorder %v143, 0.0
    %vm152 = vcmp.gt.f32.partialorder %v144, 0.0
    %vm153 = vcmp.gt.f32.partialorder %v145, 0.0
    %vm154 = vcmp.gt.f32.partialorder %v146, 0.0
    %vm155 = vcmp.gt.f32.partialorder %v147, 0.0
    %vm156 = vcmp.gt.f32.partialorder %v148, 0.0
    %v157 = vmul.f32 %v141, 0.01
    %v158 = vmul.f32 %v142, 0.01
    %v159 = vmul.f32 %v143, 0.01
    %v160 = vmul.f32 %v144, 0.01
    %v161 = vmul.f32 %v145, 0.01
    %v162 = vmul.f32 %v146, 0.01
    %v163 = vmul.f32 %v147, 0.01
    %v164 = vmul.f32 %v148, 0.01
    %v165 = vsel %vm149, %v141, %v157
    %v166 = vsel %vm150, %v142, %v158
    %v167 = vsel %vm151, %v143, %v159
    %v168 = vsel %vm152, %v144, %v160
    %v169 = vsel %vm153, %v145, %v161
    %v170 = vsel %vm154, %v146, %v162
    %v171 = vsel %vm155, %v147, %v163
    %v172 = vsel %vm156, %v148, %v164
    %v173 = vld [vmem:[%s3] sm:$0xff]
    %v174 = vld [vmem:[%s3 + $0x8] sm:$0xff]
    %v175 = vld [vmem:[%s3 + $0x10] sm:$0xff]
    %v176 = vld [vmem:[%s3 + $0x18] sm:$0xff]
    %v177 = vld [vmem:[%s3 + $0x20] sm:$0xff]
    %v178 = vld [vmem:[%s3 + $0x28] sm:$0xff]
    %v179 = vld [vmem:[%s3 + $0x30] sm:$0xff]
    %v180 = vld [vmem:[%s3 + $0x38] sm:$0xff]
    %v181 = vld [vmem:[%s4] sm:$0xff]
    %v182 = vld [vmem:[%s4 + $0x8] sm:$0xff]
    %v183 = vld [vmem:[%s4 + $0x10] sm:$0xff]
    %v184 = vld [vmem:[%s4 + $0x18] sm:$0xff]
    %v185 = vld [vmem:[%s4 + $0x20] sm:$0xff]
    %v186 = vld [vmem:[%s4 + $0x28] sm:$0xff]
    %v187 = vld [vmem:[%s4 + $0x30] sm:$0xff]
    %v188 = vld [vmem:[%s4 + $0x38] sm:$0xff]
    %190 = vset.pattern.permute.xlu0 0
    %191 = vperm.xlu0 %190, %v181
    %v192 = vpop.permute.xlu0 %191
    %195 = vset.pattern.permute.xlu0 0
    %196 = vperm.xlu0 %195, %v182
    %v197 = vpop.permute.xlu0 %196
    %200 = vset.pattern.permute.xlu0 0
    %201 = vperm.xlu0 %200, %v183
    %v202 = vpop.permute.xlu0 %201
    %205 = vset.pattern.permute.xlu0 0
    %206 = vperm.xlu0 %205, %v184
    %v207 = vpop.permute.xlu0 %206
    %210 = vset.pattern.permute.xlu0 0
    %211 = vperm.xlu0 %210, %v185
    %v212 = vpop.permute.xlu0 %211
    %215 = vset.pattern.permute.xlu0 0
    %216 = vperm.xlu0 %215, %v186
    %v217 = vpop.permute.xlu0 %216
    %220 = vset.pattern.permute.xlu0 0
    %221 = vperm.xlu0 %220, %v187
    %v222 = vpop.permute.xlu0 %221
    %225 = vset.pattern.permute.xlu0 0
    %226 = vperm.xlu0 %225, %v188
    %v227 = vpop.permute.xlu0 %226
    %vm229 = vcmask 523264
    %v231 = vsel %vm229, %v173, 0
    %v234 = vsel %vm229, %v174, 0
    %v237 = vsel %vm229, %v175, 0
    %v240 = vsel %vm229, %v176, 0
    %v243 = vsel %vm229, %v177, 0
    %v246 = vsel %vm229, %v178, 0
    %v249 = vsel %vm229, %v179, 0
    %v252 = vsel %vm229, %v180, 0
    %254 = vmatpush.msra.mxu0 0.0
    %255 = vmatpush.msra.mxu0 0.0
    %256 = vmatpush.msra.mxu0 0.0
    %257 = vmatpush.msra.mxu0 0.0
    %258 = vmatpush.msra.mxu0 0.0
    %259 = vmatpush.msra.mxu0 0.0
    %260 = vmatpush.msra.mxu0 0.0
    %261 = vmatpush.msra.mxu0 0.0
    %262 = vmatpush.msra.mxu0 %v172
    %263 = vmatpush.msra.mxu0 %v171
    %264 = vmatpush.msra.mxu0 %v170
    %265 = vmatpush.msra.mxu0 %v169
    %266 = vmatpush.msra.mxu0 %v168
    %267 = vmatpush.msra.mxu0 %v167
    %268 = vmatpush.msra.mxu0 %v166
    %269 = vmatpush.msra.mxu0 %v165
    %270 = vmatmul.f32.gmra.mxu0 %v231
    %v271 = vpop.f32.mrf.mxu0
    %v272 = vadd.f32 %v192, %v271
    %273 = vmatmul.f32.gmra.mxu0 %v234
    %v274 = vpop.f32.mrf.mxu0
    %v275 = vadd.f32 %v197, %v274
    %276 = vmatmul.f32.gmra.mxu0 %v237
    %v277 = vpop.f32.mrf.mxu0
    %v278 = vadd.f32 %v202, %v277
    %279 = vmatmul.f32.gmra.mxu0 %v240
    %v280 = vpop.f32.mrf.mxu0
    %v281 = vadd.f32 %v207, %v280
    %282 = vmatmul.f32.gmra.mxu0 %v243
    %v283 = vpop.f32.mrf.mxu0
    %v284 = vadd.f32 %v212, %v283
    %285 = vmatmul.f32.gmra.mxu0 %v246
    %v286 = vpop.f32.mrf.mxu0
    %v287 = vadd.f32 %v217, %v286
    %288 = vmatmul.f32.gmra.mxu0 %v249
    %v289 = vpop.f32.mrf.mxu0
    %v290 = vadd.f32 %v222, %v289
    %291 = vmatmul.f32.gmra.mxu0 %v252
    %v292 = vpop.f32.mrf.mxu0
    %v293 = vadd.f32 %v227, %v292
    %294 = vdwg.mxu0
    %vm295 = vcmp.gt.f32.partialorder %v272, 0.0
    %vm296 = vcmp.gt.f32.partialorder %v275, 0.0
    %vm297 = vcmp.gt.f32.partialorder %v278, 0.0
    %vm298 = vcmp.gt.f32.partialorder %v281, 0.0
    %vm299 = vcmp.gt.f32.partialorder %v284, 0.0
    %vm300 = vcmp.gt.f32.partialorder %v287, 0.0
    %vm301 = vcmp.gt.f32.partialorder %v290, 0.0
    %vm302 = vcmp.gt.f32.partialorder %v293, 0.0
    %v303 = vmul.f32 %v272, 0.01
    %v304 = vmul.f32 %v275, 0.01
    %v305 = vmul.f32 %v278, 0.01
    %v306 = vmul.f32 %v281, 0.01
    %v307 = vmul.f32 %v284, 0.01
    %v308 = vmul.f32 %v287, 0.01
    %v309 = vmul.f32 %v290, 0.01
    %v310 = vmul.f32 %v293, 0.01
    %v311 = vsel %vm295, %v272, %v303
    %v312 = vsel %vm296, %v275, %v304
    %v313 = vsel %vm297, %v278, %v305
    %v314 = vsel %vm298, %v281, %v306
    %v315 = vsel %vm299, %v284, %v307
    %v316 = vsel %vm300, %v287, %v308
    %v317 = vsel %vm301, %v290, %v309
    %v318 = vsel %vm302, %v293, %v310
    %v319 = vld [vmem:[%s5] sm:$0xff]
    %v320 = vld [vmem:[%s5 + $0x8] sm:$0xff]
    %v321 = vld [vmem:[%s5 + $0x10] sm:$0xff]
    %v322 = vld [vmem:[%s5 + $0x18] sm:$0xff]
    %v323 = vld [vmem:[%s5 + $0x20] sm:$0xff]
    %v324 = vld [vmem:[%s5 + $0x28] sm:$0xff]
    %v325 = vld [vmem:[%s5 + $0x30] sm:$0xff]
    %v326 = vld [vmem:[%s5 + $0x38] sm:$0xff]
    %v327 = vld [vmem:[%s6] sm:$0xff]
    %v328 = vld [vmem:[%s6 + $0x8] sm:$0xff]
    %v329 = vld [vmem:[%s6 + $0x10] sm:$0xff]
    %v330 = vld [vmem:[%s6 + $0x18] sm:$0xff]
    %v331 = vld [vmem:[%s6 + $0x20] sm:$0xff]
    %v332 = vld [vmem:[%s6 + $0x28] sm:$0xff]
    %v333 = vld [vmem:[%s6 + $0x30] sm:$0xff]
    %v334 = vld [vmem:[%s6 + $0x38] sm:$0xff]
    %336 = vset.pattern.permute.xlu0 0
    %337 = vperm.xlu0 %336, %v327
    %v338 = vpop.permute.xlu0 %337
    %341 = vset.pattern.permute.xlu0 0
    %342 = vperm.xlu0 %341, %v328
    %v343 = vpop.permute.xlu0 %342
    %346 = vset.pattern.permute.xlu0 0
    %347 = vperm.xlu0 %346, %v329
    %v348 = vpop.permute.xlu0 %347
    %351 = vset.pattern.permute.xlu0 0
    %352 = vperm.xlu0 %351, %v330
    %v353 = vpop.permute.xlu0 %352
    %356 = vset.pattern.permute.xlu0 0
    %357 = vperm.xlu0 %356, %v331
    %v358 = vpop.permute.xlu0 %357
    %361 = vset.pattern.permute.xlu0 0
    %362 = vperm.xlu0 %361, %v332
    %v363 = vpop.permute.xlu0 %362
    %366 = vset.pattern.permute.xlu0 0
    %367 = vperm.xlu0 %366, %v333
    %v368 = vpop.permute.xlu0 %367
    %371 = vset.pattern.permute.xlu0 0
    %372 = vperm.xlu0 %371, %v334
    %v373 = vpop.permute.xlu0 %372
    %v376 = vsel %vm229, %v319, 0
    %v379 = vsel %vm229, %v320, 0
    %v382 = vsel %vm229, %v321, 0
    %v385 = vsel %vm229, %v322, 0
    %v388 = vsel %vm229, %v323, 0
    %v391 = vsel %vm229, %v324, 0
    %v394 = vsel %vm229, %v325, 0
    %v397 = vsel %vm229, %v326, 0
    %399 = vmatpush.msra.mxu0 0.0
    %400 = vmatpush.msra.mxu0 0.0
    %401 = vmatpush.msra.mxu0 0.0
    %402 = vmatpush.msra.mxu0 0.0
    %403 = vmatpush.msra.mxu0 0.0
    %404 = vmatpush.msra.mxu0 0.0
    %405 = vmatpush.msra.mxu0 0.0
    %406 = vmatpush.msra.mxu0 0.0
    %407 = vmatpush.msra.mxu0 %v318
    %408 = vmatpush.msra.mxu0 %v317
    %409 = vmatpush.msra.mxu0 %v316
    %410 = vmatpush.msra.mxu0 %v315
    %411 = vmatpush.msra.mxu0 %v314
    %412 = vmatpush.msra.mxu0 %v313
    %413 = vmatpush.msra.mxu0 %v312
    %414 = vmatpush.msra.mxu0 %v311
    %415 = vmatmul.f32.gmra.mxu0 %v376
    %v416 = vpop.f32.mrf.mxu0
    %v417 = vadd.f32 %v338, %v416
    %418 = vmatmul.f32.gmra.mxu0 %v379
    %v419 = vpop.f32.mrf.mxu0
    %v420 = vadd.f32 %v343, %v419
    %421 = vmatmul.f32.gmra.mxu0 %v382
    %v422 = vpop.f32.mrf.mxu0
    %v423 = vadd.f32 %v348, %v422
    %424 = vmatmul.f32.gmra.mxu0 %v385
    %v425 = vpop.f32.mrf.mxu0
    %v426 = vadd.f32 %v353, %v425
    %427 = vmatmul.f32.gmra.mxu0 %v388
    %v428 = vpop.f32.mrf.mxu0
    %v429 = vadd.f32 %v358, %v428
    %430 = vmatmul.f32.gmra.mxu0 %v391
    %v431 = vpop.f32.mrf.mxu0
    %v432 = vadd.f32 %v363, %v431
    %433 = vmatmul.f32.gmra.mxu0 %v394
    %v434 = vpop.f32.mrf.mxu0
    %v435 = vadd.f32 %v368, %v434
    %436 = vmatmul.f32.gmra.mxu0 %v397
    %v437 = vpop.f32.mrf.mxu0
    %v438 = vadd.f32 %v373, %v437
    %439 = vdwg.mxu0
    %vm440 = vcmp.gt.f32.partialorder %v417, 0.0
    %vm441 = vcmp.gt.f32.partialorder %v420, 0.0
    %vm442 = vcmp.gt.f32.partialorder %v423, 0.0
    %vm443 = vcmp.gt.f32.partialorder %v426, 0.0
    %vm444 = vcmp.gt.f32.partialorder %v429, 0.0
    %vm445 = vcmp.gt.f32.partialorder %v432, 0.0
    %vm446 = vcmp.gt.f32.partialorder %v435, 0.0
    %vm447 = vcmp.gt.f32.partialorder %v438, 0.0
    %v448 = vmul.f32 %v417, 0.01
    %v449 = vmul.f32 %v420, 0.01
    %v450 = vmul.f32 %v423, 0.01
    %v451 = vmul.f32 %v426, 0.01
    %v452 = vmul.f32 %v429, 0.01
    %v453 = vmul.f32 %v432, 0.01
    %v454 = vmul.f32 %v435, 0.01
    %v455 = vmul.f32 %v438, 0.01
    %v456 = vsel %vm440, %v417, %v448
    %v457 = vsel %vm441, %v420, %v449
    %v458 = vsel %vm442, %v423, %v450
    %v459 = vsel %vm443, %v426, %v451
    %v460 = vsel %vm444, %v429, %v452
    %v461 = vsel %vm445, %v432, %v453
    %v462 = vsel %vm446, %v435, %v454
    %v463 = vsel %vm447, %v438, %v455
    %v464 = vld [vmem:[%s7] sm:$0xff]
    %v465 = vld [vmem:[%s7 + $0x8] sm:$0xf]
    %v466 = vld [vmem:[%s8] sm:$0xff]
    %v467 = vld [vmem:[%s8 + $0x8] sm:$0xf]
    %469 = vset.pattern.permute.xlu0 0
    %470 = vperm.xlu0 %469, %v466
    %v471 = vpop.permute.xlu0 %470
    %474 = vset.pattern.permute.xlu0 0
    %475 = vperm.xlu0 %474, %v467
    %v476 = vpop.permute.xlu0 %475
    %v479 = vsel %vm229, %v464, 0
    %v482 = vsel %vm229, %v465, 0
    %484 = vmatpush.msra.mxu0 0.0
    %485 = vmatpush.msra.mxu0 0.0
    %486 = vmatpush.msra.mxu0 0.0
    %487 = vmatpush.msra.mxu0 0.0
    %488 = vmatpush.msra.mxu0 0.0
    %489 = vmatpush.msra.mxu0 0.0
    %490 = vmatpush.msra.mxu0 0.0
    %491 = vmatpush.msra.mxu0 0.0
    %492 = vmatpush.msra.mxu0 %v463
    %493 = vmatpush.msra.mxu0 %v462
    %494 = vmatpush.msra.mxu0 %v461
    %495 = vmatpush.msra.mxu0 %v460
    %496 = vmatpush.msra.mxu0 %v459
    %497 = vmatpush.msra.mxu0 %v458
    %498 = vmatpush.msra.mxu0 %v457
    %499 = vmatpush.msra.mxu0 %v456
    %500 = vmatmul.f32.gmra.mxu0 %v479
    %v501 = vpop.f32.mrf.mxu0
    %v502 = vadd.f32 %v471, %v501
    %503 = vmatmul.f32.gmra.mxu0 %v482
    %v504 = vpop.f32.mrf.mxu0
    %v505 = vadd.f32 %v476, %v504
    %506 = vdwg.mxu0
    %507 = vst [vmem:[#allocation2] sm:$0xff] %v502
    %508 = vst [vmem:[#allocation2 + $0x8] sm:$0xf] %v505
    // Predicated region
    $region38: #{tpu_custom_call.1} parent=1 // pred_check
      _
    $region39: #{tpu_custom_call.1} parent=1 // pred_check_branch
      %510 = sbr.rel (0) target = $region41
    $region40: #{tpu_custom_call.1} parent=1 // pred_region
      %512 = vsyncadd [#allocation3], 0
      %s513 = sshll.u32 [#allocation2], 4
      %s514 = int_to_ptr.vmem [resolvable:$true] %s513
      %s515 = sshll.u32 %s9, 4
      %s516 = int_to_ptr.hbm [resolvable:$true] %s515
      %521 = dma.vmem_to_hbm [thread:$0]  %s514, 256, %s516, [#allocation3], 128, 128, 8
    $region41: #{tpu_custom_call.1} parent=1 // pred_fallthru
      _
    // Predicated region
    $region42: #{tpu_custom_call.1} parent=1 // pred_check
      _
    $region43: #{tpu_custom_call.1} parent=1 // pred_check_branch
      %523 = sbr.rel (0) target = $region45
    $region44: #{tpu_custom_call.1} parent=1 // pred_region
      %525 = dma.done [#allocation3], 256
    $region45: #{tpu_custom_call.1} parent=1 // pred_fallthru
      _
    %526 = vsyncpa [#allocation3], 1

</llo_original>
